<compile_context>
chip_gen: v5e
topology: v5e:2x2
jax: 0.10.0
libtpu: 0.0.40
codegen_flags: <defaults>
</compile_context>

<pallas_src>
import math

import jax
import jax.numpy as jnp
from jax.experimental import pallas as pl
from jax.experimental.pallas import tpu as pltpu


def _round_up(n, m):
    return ((n + m - 1) // m) * m


# ----------------------------- Pallas kernel -------------------------------

def _nnk_kernel(x_ref, sq_ref, gsT_ref, nab2_ref, wT_ref, o_ref, acc_ref):
    """One (batch-tile i, R-tile k) step.

    x_ref    : [tm, D]   bf16 input tile
    sq_ref   : [tm, 1]   f32  ||x||^2 per row
    gsT_ref  : [D, tr]   bf16 (a(xi)*G).T tile
    nab2_ref : [1, tr]   f32  -corr_scale * a(xi)^2 tile
    wT_ref   : [tr, BWp] bf16 scaled weights.T tile (A(xi)/sqrt(R) folded in)
    o_ref    : [tm, BWp] output tile (written on last k)
    acc_ref  : [tm, BWp] f32 VMEM accumulator
    """
    k = pl.program_id(1)

    @pl.when(k == 0)
    def _():
        acc_ref[...] = jnp.zeros_like(acc_ref)

    # [tm, tr] = [tm, D] @ [D, tr]   (MXU, bf16 in / f32 accumulate)
    dot = jnp.dot(x_ref[...], gsT_ref[...], preferred_element_type=jnp.float32)

    # exp(dot - corr) with corr = ||x||^2 * corr_scale * a(xi)^2, all f32 (EUP).
    e = jnp.exp(dot + sq_ref[...] * nab2_ref[...])

    # acc += [tm, tr] @ [tr, BWp]    (MXU, bf16 in / f32 accumulate)
    acc_ref[...] += jnp.dot(e.astype(wT_ref.dtype), wT_ref[...],
                            preferred_element_type=jnp.float32)

    @pl.when(k == pl.num_programs(1) - 1)
    def _():
        o_ref[...] = acc_ref[...].astype(o_ref.dtype)


# ------------------------- parameter preprocessing --------------------------

def prepare_nnk_params(gs, ab_coeffs, AB_coeffs, weights,
                       compute_dtype=jnp.bfloat16):
    """Fold a(xi), A(xi) and 1/sqrt(R) into the static operands (done once)."""
    R, _ = gs.shape
    ab = ab_coeffs.astype(jnp.float32).reshape(R)
    AB = AB_coeffs.astype(jnp.float32).reshape(R)
    gsT = (ab[:, None] * gs.astype(jnp.float32)).T                    # [D, R]
    wT = ((1.0 / math.sqrt(R)) *
          (weights.astype(jnp.float32) * AB[None, :])).T              # [R, BW]
    ab2 = ab * ab                                                     # [R]
    return gsT.astype(compute_dtype), wT.astype(compute_dtype), ab2


# ------------------------------ forward wrapper ------------------------------

def nnk_forward(x, gsT, wT_scaled, ab2, *, tm=256, tr=512,
                out_dtype=jnp.float32):
    """x: [B, D] or [B, S, D]. Returns [B, BW] or [B, S, BW]."""
    orig_shape = x.shape
    if x.ndim == 3:
        corr_scale = 1.0          # torch 3-D path has no /2 -- quirk preserved
        x2 = x.reshape(-1, orig_shape[-1])
    elif x.ndim == 2:
        corr_scale = 0.5
        x2 = x
    else:
        raise ValueError("Unsupported tensor shape")

    x2 = x2.astype(jnp.float32)
    B, D = x2.shape
    Dg, R = gsT.shape
    Rw, BW = wT_scaled.shape
    assert Dg == D and Rw == R and ab2.shape[0] == R

    compute_dtype = gsT.dtype

    # Exact f32 row norms; the correction scale is folded into the [1,R] vector.
    sq = jnp.sum(x2 * x2, axis=-1, keepdims=True)                      # [B, 1]
    nab2 = (-corr_scale * ab2).reshape(1, R).astype(jnp.float32)       # [1, R]

    # Tile sizes (bf16 sublane tile is 16; lane tiles in multiples of 128).
    tm = _round_up(min(tm, _round_up(B, 16)), 16)
    tr = _round_up(min(tr, _round_up(R, 128)), 128)

    Bp = _round_up(B, tm)
    Rp = _round_up(R, tr)
    BWp = _round_up(BW, 128)          # lane-dense output stores

    xb = x2.astype(compute_dtype)
    if Bp != B:
        xb = jnp.pad(xb, ((0, Bp - B), (0, 0)))
        sq = jnp.pad(sq, ((0, Bp - B), (0, 0)))
    if Rp != R:  # zero padding in R contributes exp(0)*0 = 0 to the accumulator
        gsT = jnp.pad(gsT, ((0, 0), (0, Rp - R)))
        nab2 = jnp.pad(nab2, ((0, 0), (0, Rp - R)))
        wT_scaled = jnp.pad(wT_scaled, ((0, Rp - R), (0, 0)))
    if BWp != BW:
        wT_scaled = jnp.pad(wT_scaled, ((0, 0), (0, BWp - BW)))

    grid = (Bp // tm, Rp // tr)

    out = pl.pallas_call(
        _nnk_kernel,
        out_shape=jax.ShapeDtypeStruct((Bp, BWp), out_dtype),
        grid_spec=pltpu.PrefetchScalarGridSpec(
            num_scalar_prefetch=0,
            grid=grid,
            in_specs=[
                pl.BlockSpec((tm, D), lambda i, k: (i, 0)),      # x tile
                pl.BlockSpec((tm, 1), lambda i, k: (i, 0)),      # ||x||^2
                pl.BlockSpec((D, tr), lambda i, k: (0, k)),      # (a*G).T tile
                pl.BlockSpec((1, tr), lambda i, k: (0, k)),      # -c*a^2 tile
                pl.BlockSpec((tr, BWp), lambda i, k: (k, 0)),    # weights.T tile
            ],
            out_specs=pl.BlockSpec((tm, BWp), lambda i, k: (i, 0)),
            scratch_shapes=[pltpu.VMEM((tm, BWp), jnp.float32)],
        ),
        compiler_params=pltpu.CompilerParams(
            dimension_semantics=("parallel", "arbitrary"),
            vmem_limit_bytes=32 * 1024 * 1024,
        ),
    )(xb, sq, gsT, nab2, wT_scaled)

    out = out[:B, :BW]
    if len(orig_shape) == 3:
        out = out.reshape(orig_shape[0], orig_shape[1], BW)
    return out


# -------------------- plain-JAX reference (torch semantics) -----------------

def input_to_rfs_ref(xw, AB_fun, ab_fun, xis, num_rfs, gs):
    """Pure-JAX replica of input_to_rfs_torch_vectorized (normalize=False,
    proj_matrix `gs` supplied)."""
    ab = ab_fun(xis)
    AB = AB_fun(xis)
    renorm_gs = ab[:, None] * gs
    if xw.ndim == 2:
        dot = jnp.einsum('ij,jk->ik', xw, renorm_gs.T)
        sq = jnp.sum(xw * xw, axis=-1)
        corr = jnp.outer(sq / 2, ab * ab)
    elif xw.ndim == 3:
        dot = jnp.einsum('bij,jk->bik', xw, renorm_gs.T)
        sq = jnp.sum(xw * xw, axis=-1)
        corr = jnp.einsum('pq,r->pqr', sq, ab * ab)   # NOTE: no /2 (torch quirk)
    else:
        raise ValueError("Unsupported tensor shape")
    return (1.0 / math.sqrt(num_rfs)) * AB * jnp.exp(dot - corr)


# ---------------------------------- main ------------------------------------

if __name__ == "__main__":
    key = jax.random.PRNGKey(0)
    k_x3, k_x2, k_w, k_g, k_xi = jax.random.split(key, 5)

    D, R, BW = 32, 256, 8     # dim, num_rfs, weight rows

    a_fun = lambda t: t
    A_fun = lambda t: jnp.exp(-0.5 * t * t)

    # Deterministic projection matrix (stands in for torch.randn(num_rfs, dim)
    # under torch.manual_seed; passed as `proj_matrix`).
    gs = jax.random.normal(k_g, (R, D), dtype=jnp.float32)
    xis = 0.5 * jax.random.normal(k_xi, (R,), dtype=jnp.float32)
    input_weights = 0.1 * jax.random.normal(k_w, (BW, D), dtype=jnp.float32)

    # __init__: self.weights = phi(input_weights)  (parameter setup = plain JAX)
    weights = input_to_rfs_ref(input_weights, A_fun, a_fun, xis, R, gs)  # [BW,R]
    ab_coeffs = a_fun(xis)
    AB_coeffs = A_fun(xis)

    # One-time folding of a(xi)/A(xi)/1-sqrt(R) + transposes into bf16 operands.
    gsT, wT, ab2 = prepare_nnk_params(gs, ab_coeffs, AB_coeffs, weights)

    # --- 3-D path: x of shape [batch=2, seq=8, dim=32] ---
    x3 = 0.1 * jax.random.normal(k_x3, (2, 8, D), dtype=jnp.float32)
    # Small tiles so the (batch, R-reduction) grid and accumulator are exercised.
    out3 = jax.block_until_ready(nnk_forward(x3, gsT, wT, ab2, tm=16, tr=128))
    ref3 = input_to_rfs_ref(x3, A_fun, a_fun, xis, R, gs) @ weights.T
    assert out3.shape == (2, 8, BW)
    assert jnp.allclose(out3, ref3, atol=3e-2, rtol=3e-2), "3-D mismatch vs ref"

    # --- 2-D path: x of shape [batch=16, dim=32] ---
    x2 = 0.1 * jax.random.normal(k_x2, (16, D), dtype=jnp.float32)
    out2 = jax.block_until_ready(nnk_forward(x2, gsT, wT, ab2, tm=16, tr=128))
    ref2 = input_to_rfs_ref(x2, A_fun, a_fun, xis, R, gs) @ weights.T
    assert out2.shape == (16, BW)
    assert jnp.allclose(out2, ref2, atol=3e-2, rtol=3e-2), "2-D mismatch vs ref"

    # TODO(synk): orthogonal=True (gaussian_orthogonal_random_matrix) and
    # normalize=True pre-normalization paths are not exercised; proj_matrix is
    # supplied and normalization would be plain-JAX glue outside the kernel.
    print("KERNEL_OK")
</pallas_src>

<mosaic_0001>
module attributes {stable_mosaic.version = 11 : i64} {
  func.func @_nnk_kernel(%arg0: i32, %arg1: i32, %arg2: memref<16x32xbf16, #tpu.memory_space<vmem>>, %arg3: memref<16x1xf32, #tpu.memory_space<vmem>>, %arg4: memref<32x128xbf16, #tpu.memory_space<vmem>>, %arg5: memref<1x128xf32, #tpu.memory_space<vmem>>, %arg6: memref<128x128xbf16, #tpu.memory_space<vmem>>, %arg7: memref<16x128xf32, #tpu.memory_space<vmem>>, %arg8: memref<16x128xf32, #tpu.memory_space<vmem>>) attributes {dimension_semantics = [#tpu.dimension_semantics<parallel>, #tpu.dimension_semantics<arbitrary>], iteration_bounds = array<i64: 1, 2>, scalar_prefetch = 0 : i64, scratch_operands = 1 : i64, tpu.core_type = #tpu.core_type<tc>, window_params = [{transform_indices = @transform_0, window_bounds = array<i64: 16, 32>}, {transform_indices = @transform_1, window_bounds = array<i64: 16, 1>}, {transform_indices = @transform_2, window_bounds = array<i64: 32, 128>}, {transform_indices = @transform_3, window_bounds = array<i64: 1, 128>}, {transform_indices = @transform_4, window_bounds = array<i64: 128, 128>}, {transform_indices = @transform_5, window_bounds = array<i64: 16, 128>}]} {
    %c0_i32 = arith.constant 0 : i32
    %0 = arith.cmpi eq, %arg1, %c0_i32 : i32
    %1 = arith.extui %0 : i1 to i32
    %c0_i32_0 = arith.constant 0 : i32
    %2 = arith.cmpi ne, %1, %c0_i32_0 : i32
    scf.if %2 {
      %cst_16 = arith.constant 0.000000e+00 : f32
      %22 = vector.broadcast %cst_16 : f32 to vector<16x128xf32>
      %c0_17 = arith.constant 0 : index
      %c0_18 = arith.constant 0 : index
      %23 = vector.load %arg8[%c0_17, %c0_18] : memref<16x128xf32, #tpu.memory_space<vmem>>, vector<16x128xf32>
      tpu.vector_store %arg8[%c0_17, %c0_18], %22 {strides = array<i32>} : memref<16x128xf32, #tpu.memory_space<vmem>>, vector<16x128xf32>,
    } else {
    }
    %c0 = arith.constant 0 : index
    %c0_1 = arith.constant 0 : index
    %3 = vector.load %arg2[%c0, %c0_1] : memref<16x32xbf16, #tpu.memory_space<vmem>>, vector<16x32xbf16>
    %c0_2 = arith.constant 0 : index
    %c0_3 = arith.constant 0 : index
    %4 = vector.load %arg4[%c0_2, %c0_3] : memref<32x128xbf16, #tpu.memory_space<vmem>>, vector<32x128xbf16>
    %cst = arith.constant dense<0.000000e+00> : vector<16x128xf32>
    %5 = tpu.matmul %3, %4, %cst {dimension_numbers = #tpu.dot_dimension_numbers<[1], [0], [0], [1], [0, 0, 1, 1], [], []>} : vector<16x32xbf16>, vector<32x128xbf16>, vector<16x128xf32> -> vector<16x128xf32>
    %c0_4 = arith.constant 0 : index
    %c0_5 = arith.constant 0 : index
    %6 = vector.load %arg3[%c0_4, %c0_5] : memref<16x1xf32, #tpu.memory_space<vmem>>, vector<16x1xf32>
    %c0_6 = arith.constant 0 : index
    %c0_7 = arith.constant 0 : index
    %7 = vector.load %arg5[%c0_6, %c0_7] : memref<1x128xf32, #tpu.memory_space<vmem>>, vector<1x128xf32>
    %8 = vector.broadcast %6 : vector<16x1xf32> to vector<16x128xf32>
    %9 = vector.broadcast %7 : vector<1x128xf32> to vector<16x128xf32>
    %10 = arith.mulf %8, %9 : vector<16x128xf32>
    %11 = arith.addf %5, %10 : vector<16x128xf32>
    %12 = math.exp %11 : vector<16x128xf32>
    %c0_8 = arith.constant 0 : index
    %c0_9 = arith.constant 0 : index
    %13 = vector.load %arg8[%c0_8, %c0_9] : memref<16x128xf32, #tpu.memory_space<vmem>>, vector<16x128xf32>
    %14 = arith.truncf %12 : vector<16x128xf32> to vector<16x128xbf16>
    %c0_10 = arith.constant 0 : index
    %c0_11 = arith.constant 0 : index
    %15 = vector.load %arg6[%c0_10, %c0_11] : memref<128x128xbf16, #tpu.memory_space<vmem>>, vector<128x128xbf16>
    %cst_12 = arith.constant dense<0.000000e+00> : vector<16x128xf32>
    %16 = tpu.matmul %14, %15, %cst_12 {dimension_numbers = #tpu.dot_dimension_numbers<[1], [0], [0], [1], [0, 0, 1, 1], [], []>} : vector<16x128xbf16>, vector<128x128xbf16>, vector<16x128xf32> -> vector<16x128xf32>
    %17 = arith.addf %13, %16 : vector<16x128xf32>
    %c0_13 = arith.constant 0 : index
    %c0_14 = arith.constant 0 : index
    %18 = vector.load %arg8[%c0_13, %c0_14] : memref<16x128xf32, #tpu.memory_space<vmem>>, vector<16x128xf32>
    tpu.vector_store %arg8[%c0_13, %c0_14], %17 {strides = array<i32>} : memref<16x128xf32, #tpu.memory_space<vmem>>, vector<16x128xf32>,
    %c1_i32 = arith.constant 1 : i32
    %19 = arith.cmpi eq, %arg1, %c1_i32 : i32
    %20 = arith.extui %19 : i1 to i32
    %c0_i32_15 = arith.constant 0 : i32
    %21 = arith.cmpi ne, %20, %c0_i32_15 : i32
    scf.if %21 {
      %c0_16 = arith.constant 0 : index
      %c0_17 = arith.constant 0 : index
      %22 = vector.load %arg8[%c0_16, %c0_17] : memref<16x128xf32, #tpu.memory_space<vmem>>, vector<16x128xf32>
      %c0_18 = arith.constant 0 : index
      %c0_19 = arith.constant 0 : index
      %23 = vector.load %arg7[%c0_18, %c0_19] : memref<16x128xf32, #tpu.memory_space<vmem>>, vector<16x128xf32>
      tpu.vector_store %arg7[%c0_18, %c0_19], %22 {strides = array<i32>} : memref<16x128xf32, #tpu.memory_space<vmem>>, vector<16x128xf32>,
    } else {
    }
    return
  }
  func.func @transform_0(%arg0: i32, %arg1: i32) -> (i32, i32) {
    %c0_i32 = arith.constant 0 : i32
    %c0_i32_0 = arith.constant 0 : i32
    return %arg0, %c0_i32 : i32, i32
  }
  func.func @transform_1(%arg0: i32, %arg1: i32) -> (i32, i32) {
    %c0_i32 = arith.constant 0 : i32
    %c0_i32_0 = arith.constant 0 : i32
    return %arg0, %c0_i32 : i32, i32
  }
  func.func @transform_2(%arg0: i32, %arg1: i32) -> (i32, i32) {
    %c0_i32 = arith.constant 0 : i32
    %c0_i32_0 = arith.constant 0 : i32
    return %c0_i32, %arg1 : i32, i32
  }
  func.func @transform_3(%arg0: i32, %arg1: i32) -> (i32, i32) {
    %c0_i32 = arith.constant 0 : i32
    %c0_i32_0 = arith.constant 0 : i32
    return %c0_i32, %arg1 : i32, i32
  }
  func.func @transform_4(%arg0: i32, %arg1: i32) -> (i32, i32) {
    %c0_i32 = arith.constant 0 : i32
    %c0_i32_0 = arith.constant 0 : i32
    return %arg1, %c0_i32 : i32, i32
  }
  func.func @transform_5(%arg0: i32, %arg1: i32) -> (i32, i32) {
    %c0_i32 = arith.constant 0 : i32
    %c0_i32_0 = arith.constant 0 : i32
    return %arg0, %c0_i32 : i32, i32
  }
}

</mosaic_0001>

<llo_original>
// kernel: tpu_custom_call.1
$region0: #{tpu_custom_call.1}
  #allocation0 [shape = 'u32[]', space=smem, size = 0x4, offset = 0x4, fixed_abs, tag = 'smem constant byte address 0x4 - core index']
  #allocation1 [shape = 'u32[72,128]{1,0:T(1,128)}', space=vmem, size = 0x9000, scoped, tag = 'internal scratch']
  #allocation2 [shape = 'f32[16,128]{1,0:T(8,128)}', space=vmem, size = 0x2000, scoped, tag = 'scratch operand']
  %s0 = inlined_call_operand.vmem [shape: bf16[16,32], index: 0, kind: input, shape index: {}]
  %s1 = inlined_call_operand.vmem [shape: f32[16,1], index: 1, kind: input, shape index: {}]
  %s2 = inlined_call_operand.hbm [shape: bf16[32,256], index: 2, kind: input, shape index: {}]
  %s3 = inlined_call_operand.vmem [shape: f32[1,256], index: 3, kind: input, shape index: {}]
  %s4 = inlined_call_operand.hbm [shape: bf16[256,128], index: 4, kind: input, shape index: {}]
  %s5 = inlined_call_operand.hbm [shape: f32[16,128], index: 5, kind: output, shape index: {}]
  %s6 = sld [smem:[#allocation0]]
  $region69: #{tpu_custom_call.1} parent=0
    _
  %s8 = ssub.s32 1, %s6
  %s9 = scalar_select 0, %s8, %s6
  $region1: #{tpu_custom_call.1} parent=0
    #allocation3 [shape = 'u8[16384]{0}', space=vmem, size = 0x4000, scoped, tag = 'input window, operand 2']
    #allocation4 [shape = 's32[2]{0}', space=sflag, size = 0x8, scoped, tag = 'scoped memory for tpu_custom_call.1']
    #allocation5 [shape = 's32[2]{0}', space=sflag, size = 0x8, scoped, tag = 'scoped memory for tpu_custom_call.1']
    #allocation6 [shape = 'u8[65536]{0}', space=vmem, size = 0x10000, scoped, tag = 'input window, operand 4']
    #allocation7 [shape = 's32[2]{0}', space=sflag, size = 0x8, scoped, tag = 'scoped memory for tpu_custom_call.1']
    #allocation8 [shape = 'u8[8192]{0}', space=vmem, size = 0x2000, scoped, tag = 'output window, operand 0, single buffered']
    %10 = vsyncpa [#allocation4], 0
    %s11 = scalar_lea.sflag [#allocation4], 1
    %12 = vsyncpa %s11, 0
    %13 = vsyncpa [#allocation7], 0
    %s14 = scalar_lea.sflag [#allocation7], 1
    %15 = vsyncpa %s14, 0
    %16 = vsyncpa [#allocation5], 0
    loop: start=0, step=1, limit=4
    $region2: #{tpu_custom_call.1} parent=1 // loop_pre_header
      _
    $region3: #{tpu_custom_call.1} parent=1 // loop_header
      %s18 = sphi 0, %s22
      %p19 = scmp.ge.s32.totalorder %s18, 4
      %s25 = sphi 0, %s37
      %s26 = sphi 0, %s33
      %s27 = sphi 0, %s25
      %s28 = sphi 0, %s26
      %s29 = sphi 0, %s27
      %s30 = sphi 0, %s28
      %s40 = sphi 0, %s42
      %s43 = sphi 0, %s40
      %s44 = sphi 0, %s43
      %s60 = sphi 0, %s44
      %s66 = sphi 0, %s68
      %s69 = sphi 0, %s66
      %s70 = sphi 0, %s69
      %s86 = sphi 0, %s70
      %s92 = sphi 0, %s94
      %s95 = sphi 0, %s92
      %s96 = sphi 0, %s95
      %s112 = sphi 0, %s96
      %s118 = sphi 0, %s120
      %s121 = sphi 0, %s118
      %s122 = sphi 0, %s121
      %s138 = sphi 0, %s122
      %s144 = sphi 0, %s146
      %s147 = sphi 0, %s144
      %s148 = sphi 0, %s147
      %s164 = sphi 0, %s148
      %s170 = sphi 0, %s172
      %s173 = sphi 0, %s170
      %s174 = sphi 0, %s173
      %s190 = sphi 0, %s174
    $region4: #{tpu_custom_call.1} parent=1 // loop_header_branch
      %21 = sbr.rel (%p19) target = $region8
    $region5: #{tpu_custom_call.1} parent=1 // loop_body
      %s23 = ssub.s32 %s18, 1
      %s24 = ssub.s32 %s18, 2
      %s31 = sadd.s32 1, %s26
      %p32 = scmp.ge.s32.totalorder %s31, 2
      %s33 = scalar_select %p32, 0, %s31
      %s34 = sadd.s32 1, %s25
      %s35 = scalar_select %p32, %s34, %s25
      %p36 = scmp.ge.s32.totalorder %s35, 1
      %s37 = scalar_select %p36, 0, %s35
      %s38 = ssub.s32 %s25, %s37
      %p39 = scmp.eq.s32.totalorder %s38, 0
      %s41 = sadd.s32 %s40, 1
      %s42 = scalar_select %p39, %s40, %s41
      %p45 = pneg %p39
      %p46 = scmp.eq.s32.totalorder %s18, 1
      %p47 = por %p45, %p46
      %p48 = scmp.ne.s32.totalorder %s40, %s43
      %p49 = scmp.eq.s32.totalorder %s18, 0
      %p50 = por %p48, %p49
      %p51 = scmp.ne.s32.totalorder %s40, %s43
      %p52 = scmp.eq.s32.totalorder %s23, 1
      %p53 = por %p51, %p52
      %p54 = scmp.ne.s32.totalorder %s43, %s44
      %p55 = scmp.eq.s32.totalorder %s23, 0
      %p56 = por %p54, %p55
      %p57 = scmp.ne.s32.totalorder %s43, %s44
      %p58 = scmp.eq.s32.totalorder %s24, 1
      %p59 = por %p57, %p58
      %p61 = scmp.ne.s32.totalorder %s44, %s60
      %p62 = scmp.eq.s32.totalorder %s24, 0
      %p63 = por %p61, %p62
      %s64 = ssub.s32 %s25, %s37
      %p65 = scmp.eq.s32.totalorder %s64, 0
      %s67 = sadd.s32 %s66, 1
      %s68 = scalar_select %p65, %s66, %s67
      %p71 = pneg %p65
      %p72 = scmp.eq.s32.totalorder %s18, 1
      %p73 = por %p71, %p72
      %p74 = scmp.ne.s32.totalorder %s66, %s69
      %p75 = scmp.eq.s32.totalorder %s18, 0
      %p76 = por %p74, %p75
      %p77 = scmp.ne.s32.totalorder %s66, %s69
      %p78 = scmp.eq.s32.totalorder %s23, 1
      %p79 = por %p77, %p78
      %p80 = scmp.ne.s32.totalorder %s69, %s70
      %p81 = scmp.eq.s32.totalorder %s23, 0
      %p82 = por %p80, %p81
      %p83 = scmp.ne.s32.totalorder %s69, %s70
      %p84 = scmp.eq.s32.totalorder %s24, 1
      %p85 = por %p83, %p84
      %p87 = scmp.ne.s32.totalorder %s70, %s86
      %p88 = scmp.eq.s32.totalorder %s24, 0
      %p89 = por %p87, %p88
      %s90 = ssub.s32 %s26, %s33
      %p91 = scmp.eq.s32.totalorder %s90, 0
      %s93 = sadd.s32 %s92, 1
      %s94 = scalar_select %p91, %s92, %s93
      %p97 = pneg %p91
      %p98 = scmp.eq.s32.totalorder %s18, 1
      %p99 = por %p97, %p98
      %p100 = scmp.ne.s32.totalorder %s92, %s95
      %p101 = scmp.eq.s32.totalorder %s18, 0
      %p102 = por %p100, %p101
      %p103 = scmp.ne.s32.totalorder %s92, %s95
      %p104 = scmp.eq.s32.totalorder %s23, 1
      %p105 = por %p103, %p104
      %p106 = scmp.ne.s32.totalorder %s95, %s96
      %p107 = scmp.eq.s32.totalorder %s23, 0
      %p108 = por %p106, %p107
      %p109 = scmp.ne.s32.totalorder %s95, %s96
      %p110 = scmp.eq.s32.totalorder %s24, 1
      %p111 = por %p109, %p110
      %p113 = scmp.ne.s32.totalorder %s96, %s112
      %p114 = scmp.eq.s32.totalorder %s24, 0
      %p115 = por %p113, %p114
      %s116 = ssub.s32 %s26, %s33
      %p117 = scmp.eq.s32.totalorder %s116, 0
      %s119 = sadd.s32 %s118, 1
      %s120 = scalar_select %p117, %s118, %s119
      %p123 = pneg %p117
      %p124 = scmp.eq.s32.totalorder %s18, 1
      %p125 = por %p123, %p124
      %p126 = scmp.ne.s32.totalorder %s118, %s121
      %p127 = scmp.eq.s32.totalorder %s18, 0
      %p128 = por %p126, %p127
      %p129 = scmp.ne.s32.totalorder %s118, %s121
      %p130 = scmp.eq.s32.totalorder %s23, 1
      %p131 = por %p129, %p130
      %p132 = scmp.ne.s32.totalorder %s121, %s122
      %p133 = scmp.eq.s32.totalorder %s23, 0
      %p134 = por %p132, %p133
      %p135 = scmp.ne.s32.totalorder %s121, %s122
      %p136 = scmp.eq.s32.totalorder %s24, 1
      %p137 = por %p135, %p136
      %p139 = scmp.ne.s32.totalorder %s122, %s138
      %p140 = scmp.eq.s32.totalorder %s24, 0
      %p141 = por %p139, %p140
      %s142 = ssub.s32 %s26, %s33
      %p143 = scmp.eq.s32.totalorder %s142, 0
      %s145 = sadd.s32 %s144, 1
      %s146 = scalar_select %p143, %s144, %s145
      %p149 = pneg %p143
      %p150 = scmp.eq.s32.totalorder %s18, 1
      %p151 = por %p149, %p150
      %p152 = scmp.ne.s32.totalorder %s144, %s147
      %p153 = scmp.eq.s32.totalorder %s18, 0
      %p154 = por %p152, %p153
      %p155 = scmp.ne.s32.totalorder %s144, %s147
      %p156 = scmp.eq.s32.totalorder %s23, 1
      %p157 = por %p155, %p156
      %p158 = scmp.ne.s32.totalorder %s147, %s148
      %p159 = scmp.eq.s32.totalorder %s23, 0
      %p160 = por %p158, %p159
      %p161 = scmp.ne.s32.totalorder %s147, %s148
      %p162 = scmp.eq.s32.totalorder %s24, 1
      %p163 = por %p161, %p162
      %p165 = scmp.ne.s32.totalorder %s148, %s164
      %p166 = scmp.eq.s32.totalorder %s24, 0
      %p167 = por %p165, %p166
      %s168 = ssub.s32 %s25, %s37
      %p169 = scmp.eq.s32.totalorder %s168, 0
      %s171 = sadd.s32 %s170, 1
      %s172 = scalar_select %p169, %s170, %s171
      %p175 = pneg %p169
      %p176 = scmp.eq.s32.totalorder %s18, 1
      %p177 = por %p175, %p176
      %p178 = scmp.ne.s32.totalorder %s170, %s173
      %p179 = scmp.eq.s32.totalorder %s18, 0
      %p180 = por %p178, %p179
      %p181 = scmp.ne.s32.totalorder %s170, %s173
      %p182 = scmp.eq.s32.totalorder %s23, 1
      %p183 = por %p181, %p182
      %p184 = scmp.ne.s32.totalorder %s173, %s174
      %p185 = scmp.eq.s32.totalorder %s23, 0
      %p186 = por %p184, %p185
      %p187 = scmp.ne.s32.totalorder %s173, %s174
      %p188 = scmp.eq.s32.totalorder %s24, 1
      %p189 = por %p187, %p188
      %p191 = scmp.ne.s32.totalorder %s174, %s190
      %p192 = scmp.eq.s32.totalorder %s24, 0
      %p193 = por %p191, %p192
      %p194 = scmp.le.s32.totalorder 1, %s18
      %p195 = scmp.lt.s32.totalorder %s18, 3
      %p196 = pnand %p194, %p195
      %p197 = pneg %p196
      // Predicated region
      $region9: #{tpu_custom_call.1} parent=5 // pred_check
        _
      $region10: #{tpu_custom_call.1} parent=5 // pred_check_branch
        %199 = sbr.rel (%p196) target = $region12
      $region11: #{tpu_custom_call.1} parent=5 // pred_region
        %s200 = ssub.s32 %s18, 1
        // Predicated region
        $region13: #{tpu_custom_call.1} parent=11 // pred_check
          %p201 = pneg %p56
        $region14: #{tpu_custom_call.1} parent=11 // pred_check_branch
          %203 = sbr.rel (%p201) target = $region16
        $region15: #{tpu_custom_call.1} parent=11 // pred_region
          %s204 = smul.u32 2, %s27
          %p205 = scmp.lt.s32.totalorder %s204, 1
          %s206 = scalar_select %p205, %s204, 1
          %s207 = smul.addr %s206, 4
          %s208 = scalar_lea.vmem %s0, %s207
          %s209 = smul.u32 2, %s27
        $region16: #{tpu_custom_call.1} parent=11 // pred_fallthru
          _
        // Predicated region
        $region17: #{tpu_custom_call.1} parent=11 // pred_check
          %p210 = pneg %p82
        $region18: #{tpu_custom_call.1} parent=11 // pred_check_branch
          %212 = sbr.rel (%p210) target = $region20
        $region19: #{tpu_custom_call.1} parent=11 // pred_region
          %s213 = smul.u32 2, %s27
          %p214 = scmp.lt.s32.totalorder %s213, 1
          %s215 = scalar_select %p214, %s213, 1
          %s216 = smul.addr %s215, 8
          %s217 = scalar_lea.vmem %s1, %s216
          %s218 = smul.u32 2, %s27
        $region20: #{tpu_custom_call.1} parent=11 // pred_fallthru
          _
      $region12: #{tpu_custom_call.1} parent=5 // pred_fallthru
        _
      %p219 = scmp.lt.s32.totalorder %s18, 2
      // Predicated region
      $region21: #{tpu_custom_call.1} parent=5 // pred_check
        %p220 = pneg %p219
      $region22: #{tpu_custom_call.1} parent=5 // pred_check_branch
        %222 = sbr.rel (%p220) target = $region24
      $region23: #{tpu_custom_call.1} parent=5 // pred_region
        // Predicated region
        $region25: #{tpu_custom_call.1} parent=23 // pred_check
          %p223 = pneg %p102
        $region26: #{tpu_custom_call.1} parent=23 // pred_check_branch
          %225 = sbr.rel (%p223) target = $region28
        $region27: #{tpu_custom_call.1} parent=23 // pred_region
          %s226 = sand.u32 %s92, 1
          %s227 = scalar_lea.sflag [#allocation4], %s226
          %s228 = sand.u32 %s92, 1
          %s229 = smul.addr %s228, 16
          %s230 = scalar_lea.vmem [#allocation3], %s229
          %232 = vsyncadd %s227, 0
          %s233 = smul.addr %s26, 4
          %s234 = scalar_lea.hbm %s2, %s233
          %s235 = sshll.u32 %s234, 4
          %s236 = int_to_ptr.hbm [resolvable:$true] %s235
          %s237 = sshll.u32 %s230, 4
          %s238 = int_to_ptr.vmem [resolvable:$true] %s237
          %243 = dma.hbm_to_vmem [thread:$0]  %s236, 256, %s238, %s227, 128, 64, 4
        $region28: #{tpu_custom_call.1} parent=23 // pred_fallthru
          _
        // Predicated region
        $region29: #{tpu_custom_call.1} parent=23 // pred_check
          %p244 = pneg %p128
        $region30: #{tpu_custom_call.1} parent=23 // pred_check_branch
          %246 = sbr.rel (%p244) target = $region32
        $region31: #{tpu_custom_call.1} parent=23 // pred_region
          %p247 = scmp.lt.s32.totalorder %s26, 1
          %s248 = scalar_select %p247, %s26, 1
          %s249 = scalar_lea.vmem %s3, %s248
        $region32: #{tpu_custom_call.1} parent=23 // pred_fallthru
          _
        // Predicated region
        $region33: #{tpu_custom_call.1} parent=23 // pred_check
          %p250 = pneg %p154
        $region34: #{tpu_custom_call.1} parent=23 // pred_check_branch
          %252 = sbr.rel (%p250) target = $region36
        $region35: #{tpu_custom_call.1} parent=23 // pred_region
          %s253 = sand.u32 %s144, 1
          %s254 = scalar_lea.sflag [#allocation7], %s253
          %s255 = sand.u32 %s144, 1
          %s256 = smul.addr %s255, 64
          %s257 = scalar_lea.vmem [#allocation6], %s256
          %s258 = smul.u32 16, %s26
          %260 = vsyncadd %s254, 0
          %s261 = smul.addr %s258, 4
          %s262 = scalar_lea.hbm %s4, %s261
          %s263 = sshll.u32 %s262, 4
          %s264 = int_to_ptr.hbm [resolvable:$true] %s263
          %s265 = sshll.u32 %s257, 4
          %s266 = int_to_ptr.vmem [resolvable:$true] %s265
          %271 = dma.hbm_to_vmem [thread:$0]  %s264, 1024, %s266, %s254, 64, 64, 4
        $region36: #{tpu_custom_call.1} parent=23 // pred_fallthru
          _
      $region24: #{tpu_custom_call.1} parent=5 // pred_fallthru
        _
      %p272 = scmp.le.s32.totalorder 1, %s18
      %p273 = scmp.lt.s32.totalorder %s18, 3
      %p274 = pnand %p272, %p273
      %p275 = pneg %p274
      // Predicated region
      $region37: #{tpu_custom_call.1} parent=5 // pred_check
        _
      $region38: #{tpu_custom_call.1} parent=5 // pred_check_branch
        %277 = sbr.rel (%p274) target = $region40
      $region39: #{tpu_custom_call.1} parent=5 // pred_region
        %s278 = ssub.s32 %s18, 1
        %s279 = sand.u32 %s95, 1
        %s280 = scalar_lea.sflag [#allocation4], %s279
        %s281 = sand.u32 %s95, 1
        %s282 = smul.addr %s281, 16
        %s283 = scalar_lea.vmem [#allocation3], %s282
        // Predicated region
        $region41: #{tpu_custom_call.1} parent=39 // pred_check
          %p284 = pneg %p108
        $region42: #{tpu_custom_call.1} parent=39 // pred_check_branch
          %286 = sbr.rel (%p284) target = $region44
        $region43: #{tpu_custom_call.1} parent=39 // pred_region
          %288 = dma.done %s280, 256
        $region44: #{tpu_custom_call.1} parent=39 // pred_fallthru
          _
        %s289 = sand.u32 %s147, 1
        %s290 = scalar_lea.sflag [#allocation7], %s289
        %s291 = sand.u32 %s147, 1
        %s292 = smul.addr %s291, 64
        %s293 = scalar_lea.vmem [#allocation6], %s292
        // Predicated region
        $region45: #{tpu_custom_call.1} parent=39 // pred_check
          %p294 = pneg %p160
        $region46: #{tpu_custom_call.1} parent=39 // pred_check_branch
          %296 = sbr.rel (%p294) target = $region48
        $region47: #{tpu_custom_call.1} parent=39 // pred_region
          %298 = dma.done %s290, 1024
        $region48: #{tpu_custom_call.1} parent=39 // pred_fallthru
          _
        %s299 = smul.u32 2, %s27
        %p300 = scmp.lt.s32.totalorder %s299, 1
        %s301 = scalar_select %p300, %s299, 1
        %s302 = smul.addr %s301, 4
        %s303 = scalar_lea.vmem %s0, %s302
        %p304 = pneg %p56
        %p305 = pneg %p53
        %s306 = smul.u32 2, %s27
        %p307 = scmp.lt.s32.totalorder %s306, 1
        %s308 = scalar_select %p307, %s306, 1
        %s309 = smul.addr %s308, 8
        %s310 = scalar_lea.vmem %s1, %s309
        %p311 = pneg %p82
        %p312 = pneg %p79
        %s313 = sand.u32 %s95, 1
        %s314 = scalar_lea.sflag [#allocation4], %s313
        %s315 = sand.u32 %s95, 1
        %s316 = smul.addr %s315, 16
        %s317 = scalar_lea.vmem [#allocation3], %s316
        %p318 = pneg %p108
        %p319 = pneg %p105
        %p320 = scmp.lt.s32.totalorder %s28, 1
        %s321 = scalar_select %p320, %s28, 1
        %s322 = scalar_lea.vmem %s3, %s321
        %p323 = pneg %p134
        %p324 = pneg %p131
        %s325 = sand.u32 %s147, 1
        %s326 = scalar_lea.sflag [#allocation7], %s325
        %s327 = sand.u32 %s147, 1
        %s328 = smul.addr %s327, 64
        %s329 = scalar_lea.vmem [#allocation6], %s328
        %p330 = pneg %p160
        %p331 = pneg %p157
        %p332 = pneg %p186
        %p333 = pneg %p183
        %s334 = smul.u32 2, %s27
        %p335 = scmp.lt.s32.totalorder %s334, 1
        %s336 = scalar_select %p335, %s334, 1
        %s337 = smul.addr %s336, 4
        %s338 = scalar_lea.vmem %s0, %s337
        %s339 = smul.u32 2, %s27
        %s340 = smul.u32 2, %s27
        %p341 = scmp.lt.s32.totalorder %s340, 1
        %s342 = scalar_select %p341, %s340, 1
        %s343 = smul.addr %s342, 8
        %s344 = scalar_lea.vmem %s1, %s343
        %s345 = smul.u32 2, %s27
        %p346 = scmp.lt.s32.totalorder %s28, 1
        %s347 = scalar_select %p346, %s28, 1
        %s348 = scalar_lea.vmem %s3, %s347
        %s349 = smul.u32 16, %s28
        %s350 = smul.u32 2, %s27
        %p352 = scmp.eq.s32.totalorder %s28, 0
        // Predicated region
        $region49: #{tpu_custom_call.1} parent=39 // pred_check
          %p353 = pneg %p352
        $region50: #{tpu_custom_call.1} parent=39 // pred_check_branch
          %355 = sbr.rel (%p353) target = $region52
        $region51: #{tpu_custom_call.1} parent=39 // pred_region
          %356 = vst [vmem:[#allocation2] sm:$0xff] 0.0
          %357 = vst [vmem:[#allocation2 + $0x8] sm:$0xff] 0.0
        $region52: #{tpu_custom_call.1} parent=39 // pred_fallthru
          _
        %v358 = vld [vmem:[%s338] sm:$0xf]
        %v359 = vld [vmem:[%s338 + $0x4] sm:$0xf]
        %v360 = vld [vmem:[%s283] sm:$0xf]
        %v361 = vld [vmem:[%s283 + $0x4] sm:$0xf]
        %v362 = vld [vmem:[%s283 + $0x8] sm:$0xf]
        %v363 = vld [vmem:[%s283 + $0xc] sm:$0xf]
        %v364 = vld [vmem:[%s344] sm:$0xff]
        %v365 = vld [vmem:[%s344 + $0x8] sm:$0xff]
        %v366 = vld [vmem:[%s348] sm:$0x1]
        %368 = vset.pattern.permute.xlu0 0
        %369 = vperm.xlu0 %368, %v364
        %v370 = vpop.permute.xlu0 %369
        %373 = vset.pattern.permute.xlu0 0
        %374 = vperm.xlu0 %373, %v365
        %v375 = vpop.permute.xlu0 %374
        %v378 = vperm.slane %v366, 0
        %v380 = vmul.f32 %v370, %v378
        %v381 = vmul.f32 %v375, %v378
        %v384 = vunpack.c.l.b16 %v358
        %v385 = vunpack.c.l.b16 %v359
        %v386 = vpack.c.b16 %v385, %v384
        %v391 = vunpack.c.l.b16 %v360
        %v392 = vunpack.c.l.b16 %v361
        %v393 = vunpack.c.l.b16 %v362
        %v394 = vunpack.c.l.b16 %v363
        %v395 = vpack.c.b16 %v392, %v391
        %v396 = vpack.c.b16 %v394, %v393
        %vm399 = vcmask 261120
        %v401 = vsel %vm399, %v386, 0
        %403 = vmatpush.bf16.msra.mxu0 0
        %404 = vmatpush.bf16.msra.mxu0 0
        %405 = vmatpush.bf16.msra.mxu0 0
        %406 = vmatpush.bf16.msra.mxu0 0
        %407 = vmatpush.bf16.msra.mxu0 0
        %408 = vmatpush.bf16.msra.mxu0 0
        %409 = vmatpush.bf16.msra.mxu0 %v396
        %410 = vmatpush.bf16.msra.mxu0 %v395
        %411 = vmatmul.bf16.gmra.mxu0 %v401
        %v412 = vpop.f32.mrf.mxu0
        %v413 = vadd.f32 %v380, %v412
        %v414 = vpop.f32.mrf.mxu0
        %v415 = vadd.f32 %v381, %v414
        %416 = vdwg.mxu0
        %v417 = vmul.f32 %v413, 1.442695
        %v418 = vpow.pop %v417
        %v419 = vmul.f32 %v415, 1.442695
        %v420 = vpow.pop %v419
        %v421 = vld [vmem:[#allocation2] sm:$0xff]
        %v422 = vld [vmem:[#allocation2 + $0x8] sm:$0xff]
        %v423 = vpack.c.bf16 %v420, %v418
        %v424 = vld [vmem:[%s293] sm:$0xf]
        %v425 = vld [vmem:[%s293 + $0x4] sm:$0xf]
        %v426 = vld [vmem:[%s293 + $0x8] sm:$0xf]
        %v427 = vld [vmem:[%s293 + $0xc] sm:$0xf]
        %v428 = vld [vmem:[%s293 + $0x10] sm:$0xf]
        %v429 = vld [vmem:[%s293 + $0x14] sm:$0xf]
        %v430 = vld [vmem:[%s293 + $0x18] sm:$0xf]
        %v431 = vld [vmem:[%s293 + $0x1c] sm:$0xf]
        %v432 = vld [vmem:[%s293 + $0x20] sm:$0xf]
        %v433 = vld [vmem:[%s293 + $0x24] sm:$0xf]
        %v434 = vld [vmem:[%s293 + $0x28] sm:$0xf]
        %v435 = vld [vmem:[%s293 + $0x2c] sm:$0xf]
        %v436 = vld [vmem:[%s293 + $0x30] sm:$0xf]
        %v437 = vld [vmem:[%s293 + $0x34] sm:$0xf]
        %v438 = vld [vmem:[%s293 + $0x38] sm:$0xf]
        %v439 = vld [vmem:[%s293 + $0x3c] sm:$0xf]
        %v456 = vunpack.c.l.b16 %v424
        %v457 = vunpack.c.l.b16 %v425
        %v458 = vunpack.c.l.b16 %v426
        %v459 = vunpack.c.l.b16 %v427
        %v460 = vunpack.c.l.b16 %v428
        %v461 = vunpack.c.l.b16 %v429
        %v462 = vunpack.c.l.b16 %v430
        %v463 = vunpack.c.l.b16 %v431
        %v464 = vunpack.c.l.b16 %v432
        %v465 = vunpack.c.l.b16 %v433
        %v466 = vunpack.c.l.b16 %v434
        %v467 = vunpack.c.l.b16 %v435
        %v468 = vunpack.c.l.b16 %v436
        %v469 = vunpack.c.l.b16 %v437
        %v470 = vunpack.c.l.b16 %v438
        %v471 = vunpack.c.l.b16 %v439
        %v472 = vpack.c.b16 %v457, %v456
        %v473 = vpack.c.b16 %v459, %v458
        %v474 = vpack.c.b16 %v461, %v460
        %v475 = vpack.c.b16 %v463, %v462
        %v476 = vpack.c.b16 %v465, %v464
        %v477 = vpack.c.b16 %v467, %v466
        %v478 = vpack.c.b16 %v469, %v468
        %v479 = vpack.c.b16 %v471, %v470
        %488 = vmatpush.bf16.msra.mxu0 %v479
        %489 = vmatpush.bf16.msra.mxu0 %v478
        %490 = vmatpush.bf16.msra.mxu0 %v477
        %491 = vmatpush.bf16.msra.mxu0 %v476
        %492 = vmatpush.bf16.msra.mxu0 %v475
        %493 = vmatpush.bf16.msra.mxu0 %v474
        %494 = vmatpush.bf16.msra.mxu0 %v473
        %495 = vmatpush.bf16.msra.mxu0 %v472
        %496 = vmatmul.bf16.gmra.mxu0 %v423
        %v497 = vpop.f32.mrf.mxu0
        %v498 = vadd.f32 0.0, %v497
        %v499 = vpop.f32.mrf.mxu0
        %v500 = vadd.f32 0.0, %v499
        %501 = vdwg.mxu0
        %v502 = vadd.f32 %v421, %v498
        %v503 = vadd.f32 %v422, %v500
        %504 = vst [vmem:[#allocation2] sm:$0xff] %v502
        %505 = vst [vmem:[#allocation2 + $0x8] sm:$0xff] %v503
        %p506 = scmp.eq.s32.totalorder %s28, 1
        // Predicated region
        $region53: #{tpu_custom_call.1} parent=39 // pred_check
          %p507 = pneg %p506
        $region54: #{tpu_custom_call.1} parent=39 // pred_check_branch
          %509 = sbr.rel (%p507) target = $region56
        $region55: #{tpu_custom_call.1} parent=39 // pred_region
          %v510 = vld [vmem:[#allocation2] sm:$0xff]
          %v511 = vld [vmem:[#allocation2 + $0x8] sm:$0xff]
          %512 = vst [vmem:[#allocation8] sm:$0xff] %v510
          %513 = vst [vmem:[#allocation8 + $0x8] sm:$0xff] %v511
        $region56: #{tpu_custom_call.1} parent=39 // pred_fallthru
          _
        // Predicated region
        $region57: #{tpu_custom_call.1} parent=39 // pred_check
          %p514 = pneg %p183
        $region58: #{tpu_custom_call.1} parent=39 // pred_check_branch
          %516 = sbr.rel (%p514) target = $region60
        $region59: #{tpu_custom_call.1} parent=39 // pred_region
          %s517 = smul.u32 2, %s27
          %519 = vsyncadd [#allocation5], 0
          %s520 = smul.addr %s517, 8
          %s521 = scalar_lea.hbm %s5, %s520
          %s522 = sshll.u32 [#allocation8], 4
          %s523 = int_to_ptr.vmem [resolvable:$true] %s522
          %s524 = sshll.u32 %s521, 4
          %s525 = int_to_ptr.hbm [resolvable:$true] %s524
          %530 = dma.vmem_to_hbm [thread:$0]  %s523, 256, %s525, [#allocation5], 128, 128, 8
        $region60: #{tpu_custom_call.1} parent=39 // pred_fallthru
          _
        // Predicated region
        $region61: #{tpu_custom_call.1} parent=39 // pred_check
          %p531 = pneg %p183
        $region62: #{tpu_custom_call.1} parent=39 // pred_check_branch
          %533 = sbr.rel (%p531) target = $region64
        $region63: #{tpu_custom_call.1} parent=39 // pred_region
          %535 = dma.done [#allocation5], 256
        $region64: #{tpu_custom_call.1} parent=39 // pred_fallthru
          _
      $region40: #{tpu_custom_call.1} parent=5 // pred_fallthru
        _
      %p536 = scmp.le.s32.totalorder 2, %s18
      // Predicated region
      $region65: #{tpu_custom_call.1} parent=5 // pred_check
        %p537 = pneg %p536
      $region66: #{tpu_custom_call.1} parent=5 // pred_check_branch
        %539 = sbr.rel (%p537) target = $region68
      $region67: #{tpu_custom_call.1} parent=5 // pred_region
        %s540 = ssub.s32 %s18, 2
      $region68: #{tpu_custom_call.1} parent=5 // pred_fallthru
        _
    $region6: #{tpu_custom_call.1} parent=1 // loop_footer
      %s22 = sadd.s32 1, %s18
    $region7: #{tpu_custom_call.1} parent=1 // loop_footer_branch
      %17 = sbr.rel target = $region3
    $region8: #{tpu_custom_call.1} parent=1 // loop_exit
      _
    %541 = vsyncpa [#allocation4], 1
    %s542 = scalar_lea.sflag [#allocation4], 1
    %543 = vsyncpa %s542, 1
    %544 = vsyncpa [#allocation7], 1
    %s545 = scalar_lea.sflag [#allocation7], 1
    %546 = vsyncpa %s545, 1
    %547 = vsyncpa [#allocation5], 1
    %s548 = scalar_lea.sflag [#allocation5], 1
    %549 = vsyncpa %s548, 1

</llo_original>
